<compile_context>
chip_gen: v5e
topology: v5e:2x2
jax: 0.10.0
libtpu: 0.0.40
codegen_flags: <defaults>
</compile_context>

<pallas_src>
import functools

import jax
import jax.numpy as jnp
from jax import lax
from jax.experimental import pallas as pl
from jax.experimental.pallas import tpu as pltpu

_MIX1 = 0x9E3779B9
_MIX2 = 0x85EBCA6B
_MIX3 = 0xC2B2AE35

_VMEM_LIMIT = 40 * 1024 * 1024


def _keep_mask(seed_ref, wpos_ref, hpos_ref, *, cb, h, w, block_size, thr24):
    """Derive the DropBlock keep mask (cb, H*W) for the current grid step.

    Purely value-based (hash of global element index mixed with the seed), so
    pass 1 and pass 2 reproduce bit-identical masks on any core / backend.
    """
    hw = h * w
    pad = block_size // 2
    step = pl.program_id(0)

    # ---- Bernoulli(gamma) seed map via a murmur3-style integer hash --------
    plane = step * cb + lax.broadcasted_iota(jnp.int32, (cb, hw), 0)
    inpln = lax.broadcasted_iota(jnp.int32, (cb, hw), 1)
    idx = (plane * hw + inpln).astype(jnp.uint32)
    seed = seed_ref[0].astype(jnp.uint32) * jnp.uint32(_MIX1)
    v = idx ^ seed
    v = v ^ (v >> jnp.uint32(16))
    v = v * jnp.uint32(_MIX2)
    v = v ^ (v >> jnp.uint32(13))
    v = v * jnp.uint32(_MIX3)
    v = v ^ (v >> jnp.uint32(16))
    bits24 = (v >> jnp.uint32(8)).astype(jnp.int32)      # uniform in [0, 2^24)
    m = (bits24 < thr24).astype(jnp.float32)              # Bernoulli(gamma)

    # ---- Separable BxB box filter on the flattened (lane) axis -------------
    wpos = wpos_ref[...]                                   # (1, H*W) int32
    hpos = hpos_ref[...]

    # W direction: gather m[., w + j] for j in [-pad, pad] (row-boundary mask).
    row = m
    for j in range(1, pad + 1):
        row = row + jnp.where(wpos <= (w - 1 - j), jnp.roll(m, -j, axis=1), 0.0)
        row = row + jnp.where(wpos >= j, jnp.roll(m, j, axis=1), 0.0)

    # H direction: gather row[., h + d] for d in [-pad, pad] (shift = d*W).
    msum = row
    for d in range(1, pad + 1):
        msum = msum + jnp.where(hpos <= (h - 1 - d),
                                jnp.roll(row, -d * w, axis=1), 0.0)
        msum = msum + jnp.where(hpos >= d, jnp.roll(row, d * w, axis=1), 0.0)

    # Keep where no Bernoulli seed falls inside the BxB window.
    return (msum < 1.0).astype(jnp.float32)


def _mask_sum_kernel(seed_ref, wpos_ref, hpos_ref, part_ref, *,
                     cb, h, w, block_size, thr24, nc):
    """Pass 1 (compute-only): per-step partial sums of the keep mask."""
    keep = _keep_mask(seed_ref, wpos_ref, hpos_ref,
                      cb=cb, h=h, w=w, block_size=block_size, thr24=thr24)
    if nc % cb != 0:
        # Mask planes of the (padded) tail block.
        plane = pl.program_id(0) * cb + lax.broadcasted_iota(jnp.int32, (cb, 1), 0)
        keep = keep * (plane < nc).astype(jnp.float32)
    # Cheap sublane reduction only; full reduction happens outside the kernel.
    part_ref[...] = jnp.sum(keep, axis=0, keepdims=True)[None]


def _apply_kernel(seed_ref, scale_ref, wpos_ref, hpos_ref, x_ref, o_ref, *,
                  cb, h, w, block_size, thr24):
    """Pass 2: re-derive the same mask, apply x * keep * scale in one transit."""
    keep = _keep_mask(seed_ref, wpos_ref, hpos_ref,
                      cb=cb, h=h, w=w, block_size=block_size, thr24=thr24)
    o_ref[...] = (x_ref[...].astype(jnp.float32) * keep
                  * scale_ref[0]).astype(o_ref.dtype)


@functools.partial(jax.jit,
                   static_argnames=("keep_prob", "block_size", "training",
                                    "max_block_bytes"))
def dropblock2d(x, seed, *, keep_prob=0.9, block_size=7, training=True,
                max_block_bytes=2 * 1024 * 1024):
    """DropBlock2D forward for NCHW `x` (matches the PyTorch reference)."""
    if (not training) or keep_prob == 1:
        return x

    N, C, H, W = x.shape
    if block_size % 2 != 1:
        raise ValueError("block_size must be odd (the PyTorch reference is only "
                         "shape-consistent for odd block sizes).")
    if H < block_size or W < block_size:
        raise ValueError("spatial dims must be >= block_size")

    gamma = (1.0 - keep_prob) / block_size ** 2
    for sh in (H, W):
        gamma *= sh / (sh - block_size + 1)
    thr24 = int(min(max(round(gamma * (1 << 24)), 0), (1 << 24) - 1))

    NC, HW = N * C, H * W
    xr = x.reshape(NC, HW)                    # lane-dense view (free reshape)

    # Planes per grid step: target ~max_block_bytes of f32 per x block, keep the
    # sublane dim a multiple of 8, and use cdiv (+ tail masking) so awkward NC
    # never degrades to tiny tiles.
    cap = max(1, max_block_bytes // (HW * 4))
    if NC <= cap:
        cb = NC
    else:
        cb = max(8, (cap // 8) * 8)
    num_steps = pl.cdiv(NC, cb)

    seed_arr = jnp.reshape(jnp.asarray(seed, dtype=jnp.int32), (1,))
    pos = jnp.arange(HW, dtype=jnp.int32)
    w_pos = (pos % W).reshape(1, HW)
    h_pos = (pos // W).reshape(1, HW)

    smem = pl.BlockSpec(memory_space=pltpu.MemorySpace.SMEM)
    pos_spec = pl.BlockSpec((1, HW), lambda i: (0, 0))
    cparams = pltpu.CompilerParams(dimension_semantics=("parallel",),
                                   vmem_limit_bytes=_VMEM_LIMIT)

    # ---- pass 1: keep-mask partial sums (no large HBM traffic) -------------
    partials = pl.pallas_call(
        functools.partial(_mask_sum_kernel, cb=cb, h=H, w=W,
                          block_size=block_size, thr24=thr24, nc=NC),
        grid=(num_steps,),
        in_specs=[smem, pos_spec, pos_spec],
        out_specs=pl.BlockSpec((1, 1, HW), lambda i: (i, 0, 0)),
        out_shape=jax.ShapeDtypeStruct((num_steps, 1, HW), jnp.float32),
        compiler_params=cparams,
    )(seed_arr, w_pos, h_pos)

    numel = float(NC * HW)
    scale_arr = (numel / jnp.maximum(jnp.sum(partials), 1.0)
                 ).astype(jnp.float32).reshape(1)

    # ---- pass 2: fused mask + normalization; one read + one write of x -----
    out = pl.pallas_call(
        functools.partial(_apply_kernel, cb=cb, h=H, w=W,
                          block_size=block_size, thr24=thr24),
        grid=(num_steps,),
        in_specs=[smem, smem, pos_spec, pos_spec,
                  pl.BlockSpec((cb, HW), lambda i: (i, 0))],
        out_specs=pl.BlockSpec((cb, HW), lambda i: (i, 0)),
        out_shape=jax.ShapeDtypeStruct((NC, HW), x.dtype),
        compiler_params=cparams,
    )(seed_arr, scale_arr, w_pos, h_pos, xr)

    return out.reshape(N, C, H, W)


def _reference(x, seed, keep_prob, block_size):
    """Pure-JAX reference using the identical hash (for a consistency check)."""
    N, C, H, W = x.shape
    gamma = (1.0 - keep_prob) / block_size ** 2
    for sh in (H, W):
        gamma *= sh / (sh - block_size + 1)
    thr24 = int(min(max(round(gamma * (1 << 24)), 0), (1 << 24) - 1))
    idx = jnp.arange(N * C * H * W, dtype=jnp.uint32)
    v = idx ^ (jnp.uint32(seed) * jnp.uint32(_MIX1))
    v = v ^ (v >> jnp.uint32(16))
    v = v * jnp.uint32(_MIX2)
    v = v ^ (v >> jnp.uint32(13))
    v = v * jnp.uint32(_MIX3)
    v = v ^ (v >> jnp.uint32(16))
    m = ((v >> jnp.uint32(8)).astype(jnp.int32) < thr24).astype(jnp.float32)
    m = m.reshape(N * C, H, W)
    pad = block_size // 2
    mp = jnp.pad(m, ((0, 0), (pad, pad), (pad, pad)))
    msum = jnp.zeros_like(m)
    for i in range(block_size):
        for j in range(block_size):
            msum = msum + mp[:, i:i + H, j:j + W]
    keep = (msum < 1.0).astype(jnp.float32)
    scale = m.size / jnp.maximum(jnp.sum(keep), 1.0)
    y = x.reshape(N * C, H, W) * keep * scale
    return y.reshape(x.shape).astype(x.dtype)


if __name__ == "__main__":
    key = jax.random.PRNGKey(0)
    x = jax.random.normal(key, (2, 4, 16, 16), dtype=jnp.float32)

    y = dropblock2d(x, 123, keep_prob=0.9, block_size=7, training=True)
    y = jax.block_until_ready(y)
    assert y.shape == x.shape and y.dtype == x.dtype
    assert bool(jnp.all(jnp.isfinite(y)))

    # Cross-check against the pure-JAX reference that uses the same hash.
    y_ref = _reference(x, 123, 0.9, 7)
    assert bool(jnp.allclose(y, y_ref, rtol=1e-5, atol=1e-5)), \
        float(jnp.max(jnp.abs(y - y_ref)))

    # Eval mode / keep_prob == 1 must be identity (matches the PyTorch branch).
    y_eval = jax.block_until_ready(dropblock2d(x, 123, training=False))
    assert bool(jnp.all(y_eval == x))

    print("KERNEL_OK")
</pallas_src>

<mosaic_0001>
module attributes {stable_mosaic.version = 11 : i64} {
  func.func @_apply_kernel(%arg0: i32, %arg1: memref<1xi32, #tpu.memory_space<smem>>, %arg2: memref<1xf32, #tpu.memory_space<smem>>, %arg3: memref<1x256xi32, #tpu.memory_space<vmem>>, %arg4: memref<1x256xi32, #tpu.memory_space<vmem>>, %arg5: memref<8x256xf32, #tpu.memory_space<vmem>>, %arg6: memref<8x256xf32, #tpu.memory_space<vmem>>) attributes {dimension_semantics = [#tpu.dimension_semantics<parallel>], iteration_bounds = array<i64: 1>, scalar_prefetch = 0 : i64, scratch_operands = 0 : i64, tpu.core_type = #tpu.core_type<tc>, window_params = [{transform_indices = @transform_0, window_bounds = array<i64: 1>}, {transform_indices = @transform_1, window_bounds = array<i64: 1>}, {pipeline_mode = #tpu.pipeline_mode<synchronous>, transform_indices = @transform_2, window_bounds = array<i64: 1, 256>}, {pipeline_mode = #tpu.pipeline_mode<synchronous>, transform_indices = @transform_3, window_bounds = array<i64: 1, 256>}, {transform_indices = @transform_4, window_bounds = array<i64: 8, 256>}, {transform_indices = @transform_5, window_bounds = array<i64: 8, 256>}]} {
    %c8_i32 = arith.constant 8 : i32
    %0 = arith.muli %arg0, %c8_i32 : i32
    %1 = tpu.iota {dimensions = array<i32: 0>} : vector<8x256xi32>
    %2 = vector.broadcast %0 : i32 to vector<8x256xi32>
    %3 = arith.addi %2, %1 : vector<8x256xi32>
    %4 = tpu.iota {dimensions = array<i32: 1>} : vector<8x256xi32>
    %c256_i32 = arith.constant 256 : i32
    %5 = vector.broadcast %c256_i32 : i32 to vector<8x256xi32>
    %6 = arith.muli %3, %5 : vector<8x256xi32>
    %7 = arith.addi %6, %4 : vector<8x256xi32>
    %c0 = arith.constant 0 : index
    %8 = memref.load %arg1[%c0] : memref<1xi32, #tpu.memory_space<smem>>
    %c-1640531527_i32 = arith.constant -1640531527 : i32
    %9 = arith.muli %8, %c-1640531527_i32 : i32
    %10 = vector.broadcast %9 : i32 to vector<8x256xi32>
    %11 = arith.xori %7, %10 : vector<8x256xi32>
    %c16_i32 = arith.constant 16 : i32
    %12 = vector.broadcast %c16_i32 : i32 to vector<8x256xi32>
    %13 = arith.shrui %11, %12 : vector<8x256xi32>
    %14 = arith.xori %11, %13 : vector<8x256xi32>
    %c-2048144789_i32 = arith.constant -2048144789 : i32
    %15 = vector.broadcast %c-2048144789_i32 : i32 to vector<8x256xi32>
    %16 = arith.muli %14, %15 : vector<8x256xi32>
    %c13_i32 = arith.constant 13 : i32
    %17 = vector.broadcast %c13_i32 : i32 to vector<8x256xi32>
    %18 = arith.shrui %16, %17 : vector<8x256xi32>
    %19 = arith.xori %16, %18 : vector<8x256xi32>
    %c-1028477387_i32 = arith.constant -1028477387 : i32
    %20 = vector.broadcast %c-1028477387_i32 : i32 to vector<8x256xi32>
    %21 = arith.muli %19, %20 : vector<8x256xi32>
    %c16_i32_0 = arith.constant 16 : i32
    %22 = vector.broadcast %c16_i32_0 : i32 to vector<8x256xi32>
    %23 = arith.shrui %21, %22 : vector<8x256xi32>
    %24 = arith.xori %21, %23 : vector<8x256xi32>
    %c8_i32_1 = arith.constant 8 : i32
    %25 = vector.broadcast %c8_i32_1 : i32 to vector<8x256xi32>
    %26 = arith.shrui %24, %25 : vector<8x256xi32>
    %c87652_i32 = arith.constant 87652 : i32
    %27 = vector.broadcast %c87652_i32 : i32 to vector<8x256xi32>
    %28 = arith.cmpi slt, %26, %27 : vector<8x256xi32>
    %29 = arith.extui %28 : vector<8x256xi1> to vector<8x256xi32>
    %30 = arith.sitofp %29 : vector<8x256xi32> to vector<8x256xf32>
    %c0_2 = arith.constant 0 : index
    %c0_3 = arith.constant 0 : index
    %31 = vector.load %arg3[%c0_2, %c0_3] : memref<1x256xi32, #tpu.memory_space<vmem>>, vector<1x256xi32>
    %c0_4 = arith.constant 0 : index
    %c0_5 = arith.constant 0 : index
    %32 = vector.load %arg4[%c0_4, %c0_5] : memref<1x256xi32, #tpu.memory_space<vmem>>, vector<1x256xi32>
    %c14_i32 = arith.constant 14 : i32
    %33 = vector.broadcast %c14_i32 : i32 to vector<1x256xi32>
    %34 = arith.cmpi sle, %31, %33 : vector<1x256xi32>
    %35 = vector.extract_strided_slice %30 {offsets = [0, 1], sizes = [8, 255], strides = [1, 1]} : vector<8x256xf32> to vector<8x255xf32>
    %36 = vector.extract_strided_slice %30 {offsets = [0, 0], sizes = [8, 1], strides = [1, 1]} : vector<8x256xf32> to vector<8x1xf32>
    %37 = tpu.concatenate %35, %36 in 1 : vector<8x255xf32>, vector<8x1xf32> -> vector<8x256xf32>
    %cst = arith.constant 0.000000e+00 : f32
    %38 = vector.shape_cast %34 : vector<1x256xi1> to vector<1x256xi1>
    %39 = vector.broadcast %38 : vector<1x256xi1> to vector<8x256xi1>
    %40 = vector.broadcast %cst : f32 to vector<8x256xf32>
    %41 = arith.select %39, %37, %40 : vector<8x256xi1>, vector<8x256xf32>
    %42 = arith.addf %30, %41 : vector<8x256xf32>
    %c1_i32 = arith.constant 1 : i32
    %43 = vector.broadcast %c1_i32 : i32 to vector<1x256xi32>
    %44 = arith.cmpi sge, %31, %43 : vector<1x256xi32>
    %45 = vector.extract_strided_slice %30 {offsets = [0, 255], sizes = [8, 1], strides = [1, 1]} : vector<8x256xf32> to vector<8x1xf32>
    %46 = vector.extract_strided_slice %30 {offsets = [0, 0], sizes = [8, 255], strides = [1, 1]} : vector<8x256xf32> to vector<8x255xf32>
    %47 = tpu.concatenate %45, %46 in 1 : vector<8x1xf32>, vector<8x255xf32> -> vector<8x256xf32>
    %cst_6 = arith.constant 0.000000e+00 : f32
    %48 = vector.shape_cast %44 : vector<1x256xi1> to vector<1x256xi1>
    %49 = vector.broadcast %48 : vector<1x256xi1> to vector<8x256xi1>
    %50 = vector.broadcast %cst_6 : f32 to vector<8x256xf32>
    %51 = arith.select %49, %47, %50 : vector<8x256xi1>, vector<8x256xf32>
    %52 = arith.addf %42, %51 : vector<8x256xf32>
    %c13_i32_7 = arith.constant 13 : i32
    %53 = vector.broadcast %c13_i32_7 : i32 to vector<1x256xi32>
    %54 = arith.cmpi sle, %31, %53 : vector<1x256xi32>
    %55 = vector.extract_strided_slice %30 {offsets = [0, 2], sizes = [8, 254], strides = [1, 1]} : vector<8x256xf32> to vector<8x254xf32>
    %56 = vector.extract_strided_slice %30 {offsets = [0, 0], sizes = [8, 2], strides = [1, 1]} : vector<8x256xf32> to vector<8x2xf32>
    %57 = tpu.concatenate %55, %56 in 1 : vector<8x254xf32>, vector<8x2xf32> -> vector<8x256xf32>
    %cst_8 = arith.constant 0.000000e+00 : f32
    %58 = vector.shape_cast %54 : vector<1x256xi1> to vector<1x256xi1>
    %59 = vector.broadcast %58 : vector<1x256xi1> to vector<8x256xi1>
    %60 = vector.broadcast %cst_8 : f32 to vector<8x256xf32>
    %61 = arith.select %59, %57, %60 : vector<8x256xi1>, vector<8x256xf32>
    %62 = arith.addf %52, %61 : vector<8x256xf32>
    %c2_i32 = arith.constant 2 : i32
    %63 = vector.broadcast %c2_i32 : i32 to vector<1x256xi32>
    %64 = arith.cmpi sge, %31, %63 : vector<1x256xi32>
    %65 = vector.extract_strided_slice %30 {offsets = [0, 254], sizes = [8, 2], strides = [1, 1]} : vector<8x256xf32> to vector<8x2xf32>
    %66 = vector.extract_strided_slice %30 {offsets = [0, 0], sizes = [8, 254], strides = [1, 1]} : vector<8x256xf32> to vector<8x254xf32>
    %67 = tpu.concatenate %65, %66 in 1 : vector<8x2xf32>, vector<8x254xf32> -> vector<8x256xf32>
    %cst_9 = arith.constant 0.000000e+00 : f32
    %68 = vector.shape_cast %64 : vector<1x256xi1> to vector<1x256xi1>
    %69 = vector.broadcast %68 : vector<1x256xi1> to vector<8x256xi1>
    %70 = vector.broadcast %cst_9 : f32 to vector<8x256xf32>
    %71 = arith.select %69, %67, %70 : vector<8x256xi1>, vector<8x256xf32>
    %72 = arith.addf %62, %71 : vector<8x256xf32>
    %c12_i32 = arith.constant 12 : i32
    %73 = vector.broadcast %c12_i32 : i32 to vector<1x256xi32>
    %74 = arith.cmpi sle, %31, %73 : vector<1x256xi32>
    %75 = vector.extract_strided_slice %30 {offsets = [0, 3], sizes = [8, 253], strides = [1, 1]} : vector<8x256xf32> to vector<8x253xf32>
    %76 = vector.extract_strided_slice %30 {offsets = [0, 0], sizes = [8, 3], strides = [1, 1]} : vector<8x256xf32> to vector<8x3xf32>
    %77 = tpu.concatenate %75, %76 in 1 : vector<8x253xf32>, vector<8x3xf32> -> vector<8x256xf32>
    %cst_10 = arith.constant 0.000000e+00 : f32
    %78 = vector.shape_cast %74 : vector<1x256xi1> to vector<1x256xi1>
    %79 = vector.broadcast %78 : vector<1x256xi1> to vector<8x256xi1>
    %80 = vector.broadcast %cst_10 : f32 to vector<8x256xf32>
    %81 = arith.select %79, %77, %80 : vector<8x256xi1>, vector<8x256xf32>
    %82 = arith.addf %72, %81 : vector<8x256xf32>
    %c3_i32 = arith.constant 3 : i32
    %83 = vector.broadcast %c3_i32 : i32 to vector<1x256xi32>
    %84 = arith.cmpi sge, %31, %83 : vector<1x256xi32>
    %85 = vector.extract_strided_slice %30 {offsets = [0, 253], sizes = [8, 3], strides = [1, 1]} : vector<8x256xf32> to vector<8x3xf32>
    %86 = vector.extract_strided_slice %30 {offsets = [0, 0], sizes = [8, 253], strides = [1, 1]} : vector<8x256xf32> to vector<8x253xf32>
    %87 = tpu.concatenate %85, %86 in 1 : vector<8x3xf32>, vector<8x253xf32> -> vector<8x256xf32>
    %cst_11 = arith.constant 0.000000e+00 : f32
    %88 = vector.shape_cast %84 : vector<1x256xi1> to vector<1x256xi1>
    %89 = vector.broadcast %88 : vector<1x256xi1> to vector<8x256xi1>
    %90 = vector.broadcast %cst_11 : f32 to vector<8x256xf32>
    %91 = arith.select %89, %87, %90 : vector<8x256xi1>, vector<8x256xf32>
    %92 = arith.addf %82, %91 : vector<8x256xf32>
    %c14_i32_12 = arith.constant 14 : i32
    %93 = vector.broadcast %c14_i32_12 : i32 to vector<1x256xi32>
    %94 = arith.cmpi sle, %32, %93 : vector<1x256xi32>
    %95 = vector.extract_strided_slice %92 {offsets = [0, 16], sizes = [8, 240], strides = [1, 1]} : vector<8x256xf32> to vector<8x240xf32>
    %96 = vector.extract_strided_slice %92 {offsets = [0, 0], sizes = [8, 16], strides = [1, 1]} : vector<8x256xf32> to vector<8x16xf32>
    %97 = tpu.concatenate %95, %96 in 1 : vector<8x240xf32>, vector<8x16xf32> -> vector<8x256xf32>
    %cst_13 = arith.constant 0.000000e+00 : f32
    %98 = vector.shape_cast %94 : vector<1x256xi1> to vector<1x256xi1>
    %99 = vector.broadcast %98 : vector<1x256xi1> to vector<8x256xi1>
    %100 = vector.broadcast %cst_13 : f32 to vector<8x256xf32>
    %101 = arith.select %99, %97, %100 : vector<8x256xi1>, vector<8x256xf32>
    %102 = arith.addf %92, %101 : vector<8x256xf32>
    %c1_i32_14 = arith.constant 1 : i32
    %103 = vector.broadcast %c1_i32_14 : i32 to vector<1x256xi32>
    %104 = arith.cmpi sge, %32, %103 : vector<1x256xi32>
    %105 = vector.extract_strided_slice %92 {offsets = [0, 240], sizes = [8, 16], strides = [1, 1]} : vector<8x256xf32> to vector<8x16xf32>
    %106 = vector.extract_strided_slice %92 {offsets = [0, 0], sizes = [8, 240], strides = [1, 1]} : vector<8x256xf32> to vector<8x240xf32>
    %107 = tpu.concatenate %105, %106 in 1 : vector<8x16xf32>, vector<8x240xf32> -> vector<8x256xf32>
    %cst_15 = arith.constant 0.000000e+00 : f32
    %108 = vector.shape_cast %104 : vector<1x256xi1> to vector<1x256xi1>
    %109 = vector.broadcast %108 : vector<1x256xi1> to vector<8x256xi1>
    %110 = vector.broadcast %cst_15 : f32 to vector<8x256xf32>
    %111 = arith.select %109, %107, %110 : vector<8x256xi1>, vector<8x256xf32>
    %112 = arith.addf %102, %111 : vector<8x256xf32>
    %c13_i32_16 = arith.constant 13 : i32
    %113 = vector.broadcast %c13_i32_16 : i32 to vector<1x256xi32>
    %114 = arith.cmpi sle, %32, %113 : vector<1x256xi32>
    %115 = vector.extract_strided_slice %92 {offsets = [0, 32], sizes = [8, 224], strides = [1, 1]} : vector<8x256xf32> to vector<8x224xf32>
    %116 = vector.extract_strided_slice %92 {offsets = [0, 0], sizes = [8, 32], strides = [1, 1]} : vector<8x256xf32> to vector<8x32xf32>
    %117 = tpu.concatenate %115, %116 in 1 : vector<8x224xf32>, vector<8x32xf32> -> vector<8x256xf32>
    %cst_17 = arith.constant 0.000000e+00 : f32
    %118 = vector.shape_cast %114 : vector<1x256xi1> to vector<1x256xi1>
    %119 = vector.broadcast %118 : vector<1x256xi1> to vector<8x256xi1>
    %120 = vector.broadcast %cst_17 : f32 to vector<8x256xf32>
    %121 = arith.select %119, %117, %120 : vector<8x256xi1>, vector<8x256xf32>
    %122 = arith.addf %112, %121 : vector<8x256xf32>
    %c2_i32_18 = arith.constant 2 : i32
    %123 = vector.broadcast %c2_i32_18 : i32 to vector<1x256xi32>
    %124 = arith.cmpi sge, %32, %123 : vector<1x256xi32>
    %125 = vector.extract_strided_slice %92 {offsets = [0, 224], sizes = [8, 32], strides = [1, 1]} : vector<8x256xf32> to vector<8x32xf32>
    %126 = vector.extract_strided_slice %92 {offsets = [0, 0], sizes = [8, 224], strides = [1, 1]} : vector<8x256xf32> to vector<8x224xf32>
    %127 = tpu.concatenate %125, %126 in 1 : vector<8x32xf32>, vector<8x224xf32> -> vector<8x256xf32>
    %cst_19 = arith.constant 0.000000e+00 : f32
    %128 = vector.shape_cast %124 : vector<1x256xi1> to vector<1x256xi1>
    %129 = vector.broadcast %128 : vector<1x256xi1> to vector<8x256xi1>
    %130 = vector.broadcast %cst_19 : f32 to vector<8x256xf32>
    %131 = arith.select %129, %127, %130 : vector<8x256xi1>, vector<8x256xf32>
    %132 = arith.addf %122, %131 : vector<8x256xf32>
    %c12_i32_20 = arith.constant 12 : i32
    %133 = vector.broadcast %c12_i32_20 : i32 to vector<1x256xi32>
    %134 = arith.cmpi sle, %32, %133 : vector<1x256xi32>
    %135 = vector.extract_strided_slice %92 {offsets = [0, 48], sizes = [8, 208], strides = [1, 1]} : vector<8x256xf32> to vector<8x208xf32>
    %136 = vector.extract_strided_slice %92 {offsets = [0, 0], sizes = [8, 48], strides = [1, 1]} : vector<8x256xf32> to vector<8x48xf32>
    %137 = tpu.concatenate %135, %136 in 1 : vector<8x208xf32>, vector<8x48xf32> -> vector<8x256xf32>
    %cst_21 = arith.constant 0.000000e+00 : f32
    %138 = vector.shape_cast %134 : vector<1x256xi1> to vector<1x256xi1>
    %139 = vector.broadcast %138 : vector<1x256xi1> to vector<8x256xi1>
    %140 = vector.broadcast %cst_21 : f32 to vector<8x256xf32>
    %141 = arith.select %139, %137, %140 : vector<8x256xi1>, vector<8x256xf32>
    %142 = arith.addf %132, %141 : vector<8x256xf32>
    %c3_i32_22 = arith.constant 3 : i32
    %143 = vector.broadcast %c3_i32_22 : i32 to vector<1x256xi32>
    %144 = arith.cmpi sge, %32, %143 : vector<1x256xi32>
    %145 = vector.extract_strided_slice %92 {offsets = [0, 208], sizes = [8, 48], strides = [1, 1]} : vector<8x256xf32> to vector<8x48xf32>
    %146 = vector.extract_strided_slice %92 {offsets = [0, 0], sizes = [8, 208], strides = [1, 1]} : vector<8x256xf32> to vector<8x208xf32>
    %147 = tpu.concatenate %145, %146 in 1 : vector<8x48xf32>, vector<8x208xf32> -> vector<8x256xf32>
    %cst_23 = arith.constant 0.000000e+00 : f32
    %148 = vector.shape_cast %144 : vector<1x256xi1> to vector<1x256xi1>
    %149 = vector.broadcast %148 : vector<1x256xi1> to vector<8x256xi1>
    %150 = vector.broadcast %cst_23 : f32 to vector<8x256xf32>
    %151 = arith.select %149, %147, %150 : vector<8x256xi1>, vector<8x256xf32>
    %152 = arith.addf %142, %151 : vector<8x256xf32>
    %cst_24 = arith.constant 1.000000e+00 : f32
    %153 = vector.broadcast %cst_24 : f32 to vector<8x256xf32>
    %154 = arith.cmpf olt, %152, %153 : vector<8x256xf32>
    %155 = arith.extui %154 : vector<8x256xi1> to vector<8x256xi32>
    %156 = arith.sitofp %155 : vector<8x256xi32> to vector<8x256xf32>
    %c0_25 = arith.constant 0 : index
    %c0_26 = arith.constant 0 : index
    %157 = vector.load %arg5[%c0_25, %c0_26] : memref<8x256xf32, #tpu.memory_space<vmem>>, vector<8x256xf32>
    %158 = arith.mulf %157, %156 : vector<8x256xf32>
    %c0_27 = arith.constant 0 : index
    %159 = memref.load %arg2[%c0_27] : memref<1xf32, #tpu.memory_space<smem>>
    %160 = vector.broadcast %159 : f32 to vector<8x256xf32>
    %161 = arith.mulf %158, %160 : vector<8x256xf32>
    %c0_28 = arith.constant 0 : index
    %c0_29 = arith.constant 0 : index
    %162 = vector.load %arg6[%c0_28, %c0_29] : memref<8x256xf32, #tpu.memory_space<vmem>>, vector<8x256xf32>
    tpu.vector_store %arg6[%c0_28, %c0_29], %161 {strides = array<i32>} : memref<8x256xf32, #tpu.memory_space<vmem>>, vector<8x256xf32>,
    return
  }
  func.func @transform_0(%arg0: i32) -> i32 {
    %c0_i32 = arith.constant 0 : i32
    %c0_i32_0 = arith.constant 0 : i32
    return %c0_i32 : i32
  }
  func.func @transform_1(%arg0: i32) -> i32 {
    %c0_i32 = arith.constant 0 : i32
    %c0_i32_0 = arith.constant 0 : i32
    return %c0_i32 : i32
  }
  func.func @transform_2(%arg0: i32) -> (i32, i32) {
    %c0_i32 = arith.constant 0 : i32
    %c0_i32_0 = arith.constant 0 : i32
    %c0_i32_1 = arith.constant 0 : i32
    return %c0_i32, %c0_i32_0 : i32, i32
  }
  func.func @transform_3(%arg0: i32) -> (i32, i32) {
    %c0_i32 = arith.constant 0 : i32
    %c0_i32_0 = arith.constant 0 : i32
    %c0_i32_1 = arith.constant 0 : i32
    return %c0_i32, %c0_i32_0 : i32, i32
  }
  func.func @transform_4(%arg0: i32) -> (i32, i32) {
    %c0_i32 = arith.constant 0 : i32
    %c0_i32_0 = arith.constant 0 : i32
    return %arg0, %c0_i32 : i32, i32
  }
  func.func @transform_5(%arg0: i32) -> (i32, i32) {
    %c0_i32 = arith.constant 0 : i32
    %c0_i32_0 = arith.constant 0 : i32
    return %arg0, %c0_i32 : i32, i32
  }
}

module attributes {stable_mosaic.version = 11 : i64} {
  func.func @_mask_sum_kernel(%arg0: i32, %arg1: memref<1xi32, #tpu.memory_space<smem>>, %arg2: memref<1x256xi32, #tpu.memory_space<vmem>>, %arg3: memref<1x256xi32, #tpu.memory_space<vmem>>, %arg4: memref<1x1x256xf32, #tpu.memory_space<vmem>>) attributes {dimension_semantics = [#tpu.dimension_semantics<parallel>], iteration_bounds = array<i64: 1>, scalar_prefetch = 0 : i64, scratch_operands = 0 : i64, tpu.core_type = #tpu.core_type<tc>, window_params = [{transform_indices = @transform_0, window_bounds = array<i64: 1>}, {pipeline_mode = #tpu.pipeline_mode<synchronous>, transform_indices = @transform_1, window_bounds = array<i64: 1, 256>}, {pipeline_mode = #tpu.pipeline_mode<synchronous>, transform_indices = @transform_2, window_bounds = array<i64: 1, 256>}, {transform_indices = @transform_3, window_bounds = array<i64: 1, 1, 256>}]} {
    %c8_i32 = arith.constant 8 : i32
    %0 = arith.muli %arg0, %c8_i32 : i32
    %1 = tpu.iota {dimensions = array<i32: 0>} : vector<8x256xi32>
    %2 = vector.broadcast %0 : i32 to vector<8x256xi32>
    %3 = arith.addi %2, %1 : vector<8x256xi32>
    %4 = tpu.iota {dimensions = array<i32: 1>} : vector<8x256xi32>
    %c256_i32 = arith.constant 256 : i32
    %5 = vector.broadcast %c256_i32 : i32 to vector<8x256xi32>
    %6 = arith.muli %3, %5 : vector<8x256xi32>
    %7 = arith.addi %6, %4 : vector<8x256xi32>
    %c0 = arith.constant 0 : index
    %8 = memref.load %arg1[%c0] : memref<1xi32, #tpu.memory_space<smem>>
    %c-1640531527_i32 = arith.constant -1640531527 : i32
    %9 = arith.muli %8, %c-1640531527_i32 : i32
    %10 = vector.broadcast %9 : i32 to vector<8x256xi32>
    %11 = arith.xori %7, %10 : vector<8x256xi32>
    %c16_i32 = arith.constant 16 : i32
    %12 = vector.broadcast %c16_i32 : i32 to vector<8x256xi32>
    %13 = arith.shrui %11, %12 : vector<8x256xi32>
    %14 = arith.xori %11, %13 : vector<8x256xi32>
    %c-2048144789_i32 = arith.constant -2048144789 : i32
    %15 = vector.broadcast %c-2048144789_i32 : i32 to vector<8x256xi32>
    %16 = arith.muli %14, %15 : vector<8x256xi32>
    %c13_i32 = arith.constant 13 : i32
    %17 = vector.broadcast %c13_i32 : i32 to vector<8x256xi32>
    %18 = arith.shrui %16, %17 : vector<8x256xi32>
    %19 = arith.xori %16, %18 : vector<8x256xi32>
    %c-1028477387_i32 = arith.constant -1028477387 : i32
    %20 = vector.broadcast %c-1028477387_i32 : i32 to vector<8x256xi32>
    %21 = arith.muli %19, %20 : vector<8x256xi32>
    %c16_i32_0 = arith.constant 16 : i32
    %22 = vector.broadcast %c16_i32_0 : i32 to vector<8x256xi32>
    %23 = arith.shrui %21, %22 : vector<8x256xi32>
    %24 = arith.xori %21, %23 : vector<8x256xi32>
    %c8_i32_1 = arith.constant 8 : i32
    %25 = vector.broadcast %c8_i32_1 : i32 to vector<8x256xi32>
    %26 = arith.shrui %24, %25 : vector<8x256xi32>
    %c87652_i32 = arith.constant 87652 : i32
    %27 = vector.broadcast %c87652_i32 : i32 to vector<8x256xi32>
    %28 = arith.cmpi slt, %26, %27 : vector<8x256xi32>
    %29 = arith.extui %28 : vector<8x256xi1> to vector<8x256xi32>
    %30 = arith.sitofp %29 : vector<8x256xi32> to vector<8x256xf32>
    %c0_2 = arith.constant 0 : index
    %c0_3 = arith.constant 0 : index
    %31 = vector.load %arg2[%c0_2, %c0_3] : memref<1x256xi32, #tpu.memory_space<vmem>>, vector<1x256xi32>
    %c0_4 = arith.constant 0 : index
    %c0_5 = arith.constant 0 : index
    %32 = vector.load %arg3[%c0_4, %c0_5] : memref<1x256xi32, #tpu.memory_space<vmem>>, vector<1x256xi32>
    %c14_i32 = arith.constant 14 : i32
    %33 = vector.broadcast %c14_i32 : i32 to vector<1x256xi32>
    %34 = arith.cmpi sle, %31, %33 : vector<1x256xi32>
    %35 = vector.extract_strided_slice %30 {offsets = [0, 1], sizes = [8, 255], strides = [1, 1]} : vector<8x256xf32> to vector<8x255xf32>
    %36 = vector.extract_strided_slice %30 {offsets = [0, 0], sizes = [8, 1], strides = [1, 1]} : vector<8x256xf32> to vector<8x1xf32>
    %37 = tpu.concatenate %35, %36 in 1 : vector<8x255xf32>, vector<8x1xf32> -> vector<8x256xf32>
    %cst = arith.constant 0.000000e+00 : f32
    %38 = vector.shape_cast %34 : vector<1x256xi1> to vector<1x256xi1>
    %39 = vector.broadcast %38 : vector<1x256xi1> to vector<8x256xi1>
    %40 = vector.broadcast %cst : f32 to vector<8x256xf32>
    %41 = arith.select %39, %37, %40 : vector<8x256xi1>, vector<8x256xf32>
    %42 = arith.addf %30, %41 : vector<8x256xf32>
    %c1_i32 = arith.constant 1 : i32
    %43 = vector.broadcast %c1_i32 : i32 to vector<1x256xi32>
    %44 = arith.cmpi sge, %31, %43 : vector<1x256xi32>
    %45 = vector.extract_strided_slice %30 {offsets = [0, 255], sizes = [8, 1], strides = [1, 1]} : vector<8x256xf32> to vector<8x1xf32>
    %46 = vector.extract_strided_slice %30 {offsets = [0, 0], sizes = [8, 255], strides = [1, 1]} : vector<8x256xf32> to vector<8x255xf32>
    %47 = tpu.concatenate %45, %46 in 1 : vector<8x1xf32>, vector<8x255xf32> -> vector<8x256xf32>
    %cst_6 = arith.constant 0.000000e+00 : f32
    %48 = vector.shape_cast %44 : vector<1x256xi1> to vector<1x256xi1>
    %49 = vector.broadcast %48 : vector<1x256xi1> to vector<8x256xi1>
    %50 = vector.broadcast %cst_6 : f32 to vector<8x256xf32>
    %51 = arith.select %49, %47, %50 : vector<8x256xi1>, vector<8x256xf32>
    %52 = arith.addf %42, %51 : vector<8x256xf32>
    %c13_i32_7 = arith.constant 13 : i32
    %53 = vector.broadcast %c13_i32_7 : i32 to vector<1x256xi32>
    %54 = arith.cmpi sle, %31, %53 : vector<1x256xi32>
    %55 = vector.extract_strided_slice %30 {offsets = [0, 2], sizes = [8, 254], strides = [1, 1]} : vector<8x256xf32> to vector<8x254xf32>
    %56 = vector.extract_strided_slice %30 {offsets = [0, 0], sizes = [8, 2], strides = [1, 1]} : vector<8x256xf32> to vector<8x2xf32>
    %57 = tpu.concatenate %55, %56 in 1 : vector<8x254xf32>, vector<8x2xf32> -> vector<8x256xf32>
    %cst_8 = arith.constant 0.000000e+00 : f32
    %58 = vector.shape_cast %54 : vector<1x256xi1> to vector<1x256xi1>
    %59 = vector.broadcast %58 : vector<1x256xi1> to vector<8x256xi1>
    %60 = vector.broadcast %cst_8 : f32 to vector<8x256xf32>
    %61 = arith.select %59, %57, %60 : vector<8x256xi1>, vector<8x256xf32>
    %62 = arith.addf %52, %61 : vector<8x256xf32>
    %c2_i32 = arith.constant 2 : i32
    %63 = vector.broadcast %c2_i32 : i32 to vector<1x256xi32>
    %64 = arith.cmpi sge, %31, %63 : vector<1x256xi32>
    %65 = vector.extract_strided_slice %30 {offsets = [0, 254], sizes = [8, 2], strides = [1, 1]} : vector<8x256xf32> to vector<8x2xf32>
    %66 = vector.extract_strided_slice %30 {offsets = [0, 0], sizes = [8, 254], strides = [1, 1]} : vector<8x256xf32> to vector<8x254xf32>
    %67 = tpu.concatenate %65, %66 in 1 : vector<8x2xf32>, vector<8x254xf32> -> vector<8x256xf32>
    %cst_9 = arith.constant 0.000000e+00 : f32
    %68 = vector.shape_cast %64 : vector<1x256xi1> to vector<1x256xi1>
    %69 = vector.broadcast %68 : vector<1x256xi1> to vector<8x256xi1>
    %70 = vector.broadcast %cst_9 : f32 to vector<8x256xf32>
    %71 = arith.select %69, %67, %70 : vector<8x256xi1>, vector<8x256xf32>
    %72 = arith.addf %62, %71 : vector<8x256xf32>
    %c12_i32 = arith.constant 12 : i32
    %73 = vector.broadcast %c12_i32 : i32 to vector<1x256xi32>
    %74 = arith.cmpi sle, %31, %73 : vector<1x256xi32>
    %75 = vector.extract_strided_slice %30 {offsets = [0, 3], sizes = [8, 253], strides = [1, 1]} : vector<8x256xf32> to vector<8x253xf32>
    %76 = vector.extract_strided_slice %30 {offsets = [0, 0], sizes = [8, 3], strides = [1, 1]} : vector<8x256xf32> to vector<8x3xf32>
    %77 = tpu.concatenate %75, %76 in 1 : vector<8x253xf32>, vector<8x3xf32> -> vector<8x256xf32>
    %cst_10 = arith.constant 0.000000e+00 : f32
    %78 = vector.shape_cast %74 : vector<1x256xi1> to vector<1x256xi1>
    %79 = vector.broadcast %78 : vector<1x256xi1> to vector<8x256xi1>
    %80 = vector.broadcast %cst_10 : f32 to vector<8x256xf32>
    %81 = arith.select %79, %77, %80 : vector<8x256xi1>, vector<8x256xf32>
    %82 = arith.addf %72, %81 : vector<8x256xf32>
    %c3_i32 = arith.constant 3 : i32
    %83 = vector.broadcast %c3_i32 : i32 to vector<1x256xi32>
    %84 = arith.cmpi sge, %31, %83 : vector<1x256xi32>
    %85 = vector.extract_strided_slice %30 {offsets = [0, 253], sizes = [8, 3], strides = [1, 1]} : vector<8x256xf32> to vector<8x3xf32>
    %86 = vector.extract_strided_slice %30 {offsets = [0, 0], sizes = [8, 253], strides = [1, 1]} : vector<8x256xf32> to vector<8x253xf32>
    %87 = tpu.concatenate %85, %86 in 1 : vector<8x3xf32>, vector<8x253xf32> -> vector<8x256xf32>
    %cst_11 = arith.constant 0.000000e+00 : f32
    %88 = vector.shape_cast %84 : vector<1x256xi1> to vector<1x256xi1>
    %89 = vector.broadcast %88 : vector<1x256xi1> to vector<8x256xi1>
    %90 = vector.broadcast %cst_11 : f32 to vector<8x256xf32>
    %91 = arith.select %89, %87, %90 : vector<8x256xi1>, vector<8x256xf32>
    %92 = arith.addf %82, %91 : vector<8x256xf32>
    %c14_i32_12 = arith.constant 14 : i32
    %93 = vector.broadcast %c14_i32_12 : i32 to vector<1x256xi32>
    %94 = arith.cmpi sle, %32, %93 : vector<1x256xi32>
    %95 = vector.extract_strided_slice %92 {offsets = [0, 16], sizes = [8, 240], strides = [1, 1]} : vector<8x256xf32> to vector<8x240xf32>
    %96 = vector.extract_strided_slice %92 {offsets = [0, 0], sizes = [8, 16], strides = [1, 1]} : vector<8x256xf32> to vector<8x16xf32>
    %97 = tpu.concatenate %95, %96 in 1 : vector<8x240xf32>, vector<8x16xf32> -> vector<8x256xf32>
    %cst_13 = arith.constant 0.000000e+00 : f32
    %98 = vector.shape_cast %94 : vector<1x256xi1> to vector<1x256xi1>
    %99 = vector.broadcast %98 : vector<1x256xi1> to vector<8x256xi1>
    %100 = vector.broadcast %cst_13 : f32 to vector<8x256xf32>
    %101 = arith.select %99, %97, %100 : vector<8x256xi1>, vector<8x256xf32>
    %102 = arith.addf %92, %101 : vector<8x256xf32>
    %c1_i32_14 = arith.constant 1 : i32
    %103 = vector.broadcast %c1_i32_14 : i32 to vector<1x256xi32>
    %104 = arith.cmpi sge, %32, %103 : vector<1x256xi32>
    %105 = vector.extract_strided_slice %92 {offsets = [0, 240], sizes = [8, 16], strides = [1, 1]} : vector<8x256xf32> to vector<8x16xf32>
    %106 = vector.extract_strided_slice %92 {offsets = [0, 0], sizes = [8, 240], strides = [1, 1]} : vector<8x256xf32> to vector<8x240xf32>
    %107 = tpu.concatenate %105, %106 in 1 : vector<8x16xf32>, vector<8x240xf32> -> vector<8x256xf32>
    %cst_15 = arith.constant 0.000000e+00 : f32
    %108 = vector.shape_cast %104 : vector<1x256xi1> to vector<1x256xi1>
    %109 = vector.broadcast %108 : vector<1x256xi1> to vector<8x256xi1>
    %110 = vector.broadcast %cst_15 : f32 to vector<8x256xf32>
    %111 = arith.select %109, %107, %110 : vector<8x256xi1>, vector<8x256xf32>
    %112 = arith.addf %102, %111 : vector<8x256xf32>
    %c13_i32_16 = arith.constant 13 : i32
    %113 = vector.broadcast %c13_i32_16 : i32 to vector<1x256xi32>
    %114 = arith.cmpi sle, %32, %113 : vector<1x256xi32>
    %115 = vector.extract_strided_slice %92 {offsets = [0, 32], sizes = [8, 224], strides = [1, 1]} : vector<8x256xf32> to vector<8x224xf32>
    %116 = vector.extract_strided_slice %92 {offsets = [0, 0], sizes = [8, 32], strides = [1, 1]} : vector<8x256xf32> to vector<8x32xf32>
    %117 = tpu.concatenate %115, %116 in 1 : vector<8x224xf32>, vector<8x32xf32> -> vector<8x256xf32>
    %cst_17 = arith.constant 0.000000e+00 : f32
    %118 = vector.shape_cast %114 : vector<1x256xi1> to vector<1x256xi1>
    %119 = vector.broadcast %118 : vector<1x256xi1> to vector<8x256xi1>
    %120 = vector.broadcast %cst_17 : f32 to vector<8x256xf32>
    %121 = arith.select %119, %117, %120 : vector<8x256xi1>, vector<8x256xf32>
    %122 = arith.addf %112, %121 : vector<8x256xf32>
    %c2_i32_18 = arith.constant 2 : i32
    %123 = vector.broadcast %c2_i32_18 : i32 to vector<1x256xi32>
    %124 = arith.cmpi sge, %32, %123 : vector<1x256xi32>
    %125 = vector.extract_strided_slice %92 {offsets = [0, 224], sizes = [8, 32], strides = [1, 1]} : vector<8x256xf32> to vector<8x32xf32>
    %126 = vector.extract_strided_slice %92 {offsets = [0, 0], sizes = [8, 224], strides = [1, 1]} : vector<8x256xf32> to vector<8x224xf32>
    %127 = tpu.concatenate %125, %126 in 1 : vector<8x32xf32>, vector<8x224xf32> -> vector<8x256xf32>
    %cst_19 = arith.constant 0.000000e+00 : f32
    %128 = vector.shape_cast %124 : vector<1x256xi1> to vector<1x256xi1>
    %129 = vector.broadcast %128 : vector<1x256xi1> to vector<8x256xi1>
    %130 = vector.broadcast %cst_19 : f32 to vector<8x256xf32>
    %131 = arith.select %129, %127, %130 : vector<8x256xi1>, vector<8x256xf32>
    %132 = arith.addf %122, %131 : vector<8x256xf32>
    %c12_i32_20 = arith.constant 12 : i32
    %133 = vector.broadcast %c12_i32_20 : i32 to vector<1x256xi32>
    %134 = arith.cmpi sle, %32, %133 : vector<1x256xi32>
    %135 = vector.extract_strided_slice %92 {offsets = [0, 48], sizes = [8, 208], strides = [1, 1]} : vector<8x256xf32> to vector<8x208xf32>
    %136 = vector.extract_strided_slice %92 {offsets = [0, 0], sizes = [8, 48], strides = [1, 1]} : vector<8x256xf32> to vector<8x48xf32>
    %137 = tpu.concatenate %135, %136 in 1 : vector<8x208xf32>, vector<8x48xf32> -> vector<8x256xf32>
    %cst_21 = arith.constant 0.000000e+00 : f32
    %138 = vector.shape_cast %134 : vector<1x256xi1> to vector<1x256xi1>
    %139 = vector.broadcast %138 : vector<1x256xi1> to vector<8x256xi1>
    %140 = vector.broadcast %cst_21 : f32 to vector<8x256xf32>
    %141 = arith.select %139, %137, %140 : vector<8x256xi1>, vector<8x256xf32>
    %142 = arith.addf %132, %141 : vector<8x256xf32>
    %c3_i32_22 = arith.constant 3 : i32
    %143 = vector.broadcast %c3_i32_22 : i32 to vector<1x256xi32>
    %144 = arith.cmpi sge, %32, %143 : vector<1x256xi32>
    %145 = vector.extract_strided_slice %92 {offsets = [0, 208], sizes = [8, 48], strides = [1, 1]} : vector<8x256xf32> to vector<8x48xf32>
    %146 = vector.extract_strided_slice %92 {offsets = [0, 0], sizes = [8, 208], strides = [1, 1]} : vector<8x256xf32> to vector<8x208xf32>
    %147 = tpu.concatenate %145, %146 in 1 : vector<8x48xf32>, vector<8x208xf32> -> vector<8x256xf32>
    %cst_23 = arith.constant 0.000000e+00 : f32
    %148 = vector.shape_cast %144 : vector<1x256xi1> to vector<1x256xi1>
    %149 = vector.broadcast %148 : vector<1x256xi1> to vector<8x256xi1>
    %150 = vector.broadcast %cst_23 : f32 to vector<8x256xf32>
    %151 = arith.select %149, %147, %150 : vector<8x256xi1>, vector<8x256xf32>
    %152 = arith.addf %142, %151 : vector<8x256xf32>
    %cst_24 = arith.constant 1.000000e+00 : f32
    %153 = vector.broadcast %cst_24 : f32 to vector<8x256xf32>
    %154 = arith.cmpf olt, %152, %153 : vector<8x256xf32>
    %155 = arith.extui %154 : vector<8x256xi1> to vector<8x256xi32>
    %156 = arith.sitofp %155 : vector<8x256xi32> to vector<8x256xf32>
    %cst_25 = arith.constant dense<0.000000e+00> : vector<256xf32>
    %157 = vector.multi_reduction <add>, %156, %cst_25 [0] : vector<8x256xf32> to vector<256xf32>
    %158 = vector.shape_cast %157 : vector<256xf32> to vector<1x256xf32>
    %159 = vector.shape_cast %158 : vector<1x256xf32> to vector<1x1x256xf32>
    %c0_26 = arith.constant 0 : index
    %c0_27 = arith.constant 0 : index
    %c0_28 = arith.constant 0 : index
    %160 = vector.load %arg4[%c0_26, %c0_27, %c0_28] : memref<1x1x256xf32, #tpu.memory_space<vmem>>, vector<1x1x256xf32>
    tpu.vector_store %arg4[%c0_26, %c0_27, %c0_28], %159 {strides = array<i32>} : memref<1x1x256xf32, #tpu.memory_space<vmem>>, vector<1x1x256xf32>,
    return
  }
  func.func @transform_0(%arg0: i32) -> i32 {
    %c0_i32 = arith.constant 0 : i32
    %c0_i32_0 = arith.constant 0 : i32
    return %c0_i32 : i32
  }
  func.func @transform_1(%arg0: i32) -> (i32, i32) {
    %c0_i32 = arith.constant 0 : i32
    %c0_i32_0 = arith.constant 0 : i32
    %c0_i32_1 = arith.constant 0 : i32
    return %c0_i32, %c0_i32_0 : i32, i32
  }
  func.func @transform_2(%arg0: i32) -> (i32, i32) {
    %c0_i32 = arith.constant 0 : i32
    %c0_i32_0 = arith.constant 0 : i32
    %c0_i32_1 = arith.constant 0 : i32
    return %c0_i32, %c0_i32_0 : i32, i32
  }
  func.func @transform_3(%arg0: i32) -> (i32, i32, i32) {
    %c0_i32 = arith.constant 0 : i32
    %c0_i32_0 = arith.constant 0 : i32
    %c0_i32_1 = arith.constant 0 : i32
    return %arg0, %c0_i32, %c0_i32_0 : i32, i32, i32
  }
}

</mosaic_0001>

<llo_original>
// kernel: dropblock2d.2
$region0: #{dropblock2d.2}
  #allocation0 [shape = 'u32[]', space=smem, size = 0x4, offset = 0x4, fixed_abs, tag = 'smem constant byte address 0x4 - core index']
  #allocation1 [shape = 'u32[72,128]{1,0:T(1,128)}', space=vmem, size = 0x9000, scoped, tag = 'internal scratch']
  #allocation2 [shape = 's32[1]{0:T(128)S(6)}', space=smem, size = 0x200, scoped, tag = 'scoped memory for dropblock2d.2']
  %s0 = inlined_call_operand.<no memory space> [shape: s32[1], index: 0, kind: input, shape index: {}]
  %s1 = inlined_call_operand.vmem [shape: s32[1,256], index: 1, kind: input, shape index: {}]
  %s2 = inlined_call_operand.vmem [shape: s32[1,256], index: 2, kind: input, shape index: {}]
  %s3 = inlined_call_operand.vmem [shape: f32[1,1,256], index: 3, kind: output, shape index: {}]
  %s4 = sld [smem:[#allocation0]]
  $region22: #{dropblock2d.2} parent=0
    _
  %s6 = ssub.s32 1, %s4
  %s7 = scalar_select 0, %s6, %s4
  %8 = sst [smem:[#allocation2]] %s0
  // Predicated region
  $region2: #{dropblock2d.2} parent=0 // pred_check
    _
  $region3: #{dropblock2d.2} parent=0 // pred_check_branch
    %10 = sbr.rel (0) target = $region5
  $region4: #{dropblock2d.2} parent=0 // pred_region
    _
  $region5: #{dropblock2d.2} parent=0 // pred_fallthru
    _
  // Predicated region
  $region6: #{dropblock2d.2} parent=0 // pred_check
    _
  $region7: #{dropblock2d.2} parent=0 // pred_check_branch
    %12 = sbr.rel (0) target = $region9
  $region8: #{dropblock2d.2} parent=0 // pred_region
    _
  $region9: #{dropblock2d.2} parent=0 // pred_fallthru
    _
  // Predicated region
  $region10: #{dropblock2d.2} parent=0 // pred_check
    _
  $region11: #{dropblock2d.2} parent=0 // pred_check_branch
    %14 = sbr.rel (0) target = $region13
  $region12: #{dropblock2d.2} parent=0 // pred_region
    _
  $region13: #{dropblock2d.2} parent=0 // pred_fallthru
    _
  %s15 = smul.u32 0, 8
  %v16 = vlaneseq
  %v17 = vshrl.u32 %v16, 7
  %v18 = vstv %s15
  %v19 = vadd.s32 %v18, %v17
  %v20 = vlaneseq
  %v21 = vand.u32 %v20, 127
  %v22 = vadd.s32 %v21, 128
  %v23 = vmul.u32 %v19, 256
  %v24 = vadd.s32 %v23, %v21
  %v25 = vadd.s32 %v23, %v22
  %s26 = sld [smem:[#allocation2]]
  %s27 = smul.u32 %s26, 2654435769
  %v28 = vstv %s27
  %v29 = vxor.u32 %v24, %v28
  %v30 = vxor.u32 %v25, %v28
  %v31 = vshrl.u32 %v29, 16
  %v32 = vshrl.u32 %v30, 16
  %v33 = vxor.u32 %v29, %v31
  %v34 = vxor.u32 %v30, %v32
  %v35 = vmul.u32 %v33, 2246822507
  %v36 = vmul.u32 %v34, 2246822507
  %v37 = vshrl.u32 %v35, 13
  %v38 = vshrl.u32 %v36, 13
  %v39 = vxor.u32 %v35, %v37
  %v40 = vxor.u32 %v36, %v38
  %v41 = vmul.u32 %v39, 3266489909
  %v42 = vmul.u32 %v40, 3266489909
  %v43 = vshrl.u32 %v41, 16
  %v44 = vshrl.u32 %v42, 16
  %v45 = vxor.u32 %v41, %v43
  %v46 = vxor.u32 %v42, %v44
  %v47 = vshrl.u32 %v45, 8
  %v48 = vshrl.u32 %v46, 8
  %vm49 = vcmp.lt.s32.totalorder %v47, 87652
  %vm50 = vcmp.lt.s32.totalorder %v48, 87652
  %v51 = vsel %vm49, 1, 0
  %v52 = vsel %vm50, 1, 0
  %v53 = vcvt.s32.f32 %v51
  %v54 = vcvt.s32.f32 %v52
  %v55 = vld [vmem:[%s1] sm:$0x3]
  %v56 = vld [vmem:[%s2] sm:$0x3]
  %vm57 = vcmp.le.s32.totalorder %v55, 14
  %60 = vrot.lane.b32.xlu0 %v53, 127
  %v61 = vpop.permute.xlu0 %60
  %62 = vrot.lane.b32.xlu0 %v54, 127
  %v63 = vpop.permute.xlu0 %62
  %vm64 = vcmask 1039360
  %v65 = vsel %vm64, %v61, %v63
  %v69 = vsel %vm64, %v63, %v61
  %v70 = vsel %vm57, 1, 0
  %v71 = vperm.slane %v70, 0
  %v72 = vperm.slane %v70, 1
  %vm73 = vcmp.eq.s32.totalorder %v71, 1
  %vm74 = vcmp.eq.s32.totalorder %v72, 1
  %v75 = vsel %vm73, %v65, 0.0
  %v76 = vsel %vm74, %v69, 0.0
  %v77 = vadd.f32 %v53, %v75
  %v78 = vadd.f32 %v54, %v76
  %vm79 = vcmp.ge.s32.totalorder %v55, 1
  %80 = vrot.lane.b32.xlu0 %v54, 1
  %v81 = vpop.permute.xlu0 %80
  %83 = vrot.lane.b32.xlu0 %v53, 1
  %v84 = vpop.permute.xlu0 %83
  %vm85 = vcmask 7168
  %v86 = vsel %vm85, %v84, %v81
  %v89 = vsel %vm85, %v81, %v84
  %v90 = vsel %vm79, 1, 0
  %v91 = vperm.slane %v90, 0
  %v92 = vperm.slane %v90, 1
  %vm93 = vcmp.eq.s32.totalorder %v91, 1
  %vm94 = vcmp.eq.s32.totalorder %v92, 1
  %v95 = vsel %vm93, %v89, 0.0
  %v96 = vsel %vm94, %v86, 0.0
  %v97 = vadd.f32 %v77, %v95
  %v98 = vadd.f32 %v78, %v96
  %vm99 = vcmp.le.s32.totalorder %v55, 13
  %100 = vrot.lane.b32.xlu0 %v53, 126
  %v101 = vpop.permute.xlu0 %100
  %102 = vrot.lane.b32.xlu0 %v54, 126
  %v103 = vpop.permute.xlu0 %102
  %vm104 = vcmask 1031168
  %v105 = vsel %vm104, %v101, %v103
  %v109 = vsel %vm104, %v103, %v101
  %v110 = vsel %vm99, 1, 0
  %v111 = vperm.slane %v110, 0
  %v112 = vperm.slane %v110, 1
  %vm113 = vcmp.eq.s32.totalorder %v111, 1
  %vm114 = vcmp.eq.s32.totalorder %v112, 1
  %v115 = vsel %vm113, %v105, 0.0
  %v116 = vsel %vm114, %v109, 0.0
  %v117 = vadd.f32 %v97, %v115
  %v118 = vadd.f32 %v98, %v116
  %vm119 = vcmp.ge.s32.totalorder %v55, 2
  %120 = vrot.lane.b32.xlu0 %v54, 2
  %v121 = vpop.permute.xlu0 %120
  %123 = vrot.lane.b32.xlu0 %v53, 2
  %v124 = vpop.permute.xlu0 %123
  %vm125 = vcmask 15360
  %v126 = vsel %vm125, %v124, %v121
  %v129 = vsel %vm125, %v121, %v124
  %v130 = vsel %vm119, 1, 0
  %v131 = vperm.slane %v130, 0
  %v132 = vperm.slane %v130, 1
  %vm133 = vcmp.eq.s32.totalorder %v131, 1
  %vm134 = vcmp.eq.s32.totalorder %v132, 1
  %v135 = vsel %vm133, %v129, 0.0
  %v136 = vsel %vm134, %v126, 0.0
  %v137 = vadd.f32 %v117, %v135
  %v138 = vadd.f32 %v118, %v136
  %vm139 = vcmp.le.s32.totalorder %v55, 12
  %140 = vrot.lane.b32.xlu0 %v53, 125
  %v141 = vpop.permute.xlu0 %140
  %142 = vrot.lane.b32.xlu0 %v54, 125
  %v143 = vpop.permute.xlu0 %142
  %vm144 = vcmask 1022976
  %v145 = vsel %vm144, %v141, %v143
  %v149 = vsel %vm144, %v143, %v141
  %v150 = vsel %vm139, 1, 0
  %v151 = vperm.slane %v150, 0
  %v152 = vperm.slane %v150, 1
  %vm153 = vcmp.eq.s32.totalorder %v151, 1
  %vm154 = vcmp.eq.s32.totalorder %v152, 1
  %v155 = vsel %vm153, %v145, 0.0
  %v156 = vsel %vm154, %v149, 0.0
  %v157 = vadd.f32 %v137, %v155
  %v158 = vadd.f32 %v138, %v156
  %vm159 = vcmp.ge.s32.totalorder %v55, 3
  %160 = vrot.lane.b32.xlu0 %v54, 3
  %v161 = vpop.permute.xlu0 %160
  %163 = vrot.lane.b32.xlu0 %v53, 3
  %v164 = vpop.permute.xlu0 %163
  %vm165 = vcmask 23552
  %v166 = vsel %vm165, %v164, %v161
  %v169 = vsel %vm165, %v161, %v164
  %v170 = vsel %vm159, 1, 0
  %v171 = vperm.slane %v170, 0
  %v172 = vperm.slane %v170, 1
  %vm173 = vcmp.eq.s32.totalorder %v171, 1
  %vm174 = vcmp.eq.s32.totalorder %v172, 1
  %v175 = vsel %vm173, %v169, 0.0
  %v176 = vsel %vm174, %v166, 0.0
  %v177 = vadd.f32 %v157, %v175
  %v178 = vadd.f32 %v158, %v176
  %vm179 = vcmp.le.s32.totalorder %v56, 14
  %182 = vrot.lane.b32.xlu0 %v177, 112
  %v183 = vpop.permute.xlu0 %182
  %184 = vrot.lane.b32.xlu0 %v178, 112
  %v185 = vpop.permute.xlu0 %184
  %vm186 = vcmask 916480
  %v187 = vsel %vm186, %v183, %v185
  %v191 = vsel %vm186, %v185, %v183
  %v192 = vsel %vm179, 1, 0
  %v193 = vperm.slane %v192, 0
  %v194 = vperm.slane %v192, 1
  %vm195 = vcmp.eq.s32.totalorder %v193, 1
  %vm196 = vcmp.eq.s32.totalorder %v194, 1
  %v197 = vsel %vm195, %v187, 0.0
  %v198 = vsel %vm196, %v191, 0.0
  %v199 = vadd.f32 %v177, %v197
  %v200 = vadd.f32 %v178, %v198
  %vm201 = vcmp.ge.s32.totalorder %v56, 1
  %202 = vrot.lane.b32.xlu0 %v178, 16
  %v203 = vpop.permute.xlu0 %202
  %205 = vrot.lane.b32.xlu0 %v177, 16
  %v206 = vpop.permute.xlu0 %205
  %vm207 = vcmask 130048
  %v208 = vsel %vm207, %v206, %v203
  %v211 = vsel %vm207, %v203, %v206
  %v212 = vsel %vm201, 1, 0
  %v213 = vperm.slane %v212, 0
  %v214 = vperm.slane %v212, 1
  %vm215 = vcmp.eq.s32.totalorder %v213, 1
  %vm216 = vcmp.eq.s32.totalorder %v214, 1
  %v217 = vsel %vm215, %v211, 0.0
  %v218 = vsel %vm216, %v208, 0.0
  %v219 = vadd.f32 %v199, %v217
  %v220 = vadd.f32 %v200, %v218
  %vm221 = vcmp.le.s32.totalorder %v56, 13
  %222 = vrot.lane.b32.xlu0 %v177, 96
  %v223 = vpop.permute.xlu0 %222
  %224 = vrot.lane.b32.xlu0 %v178, 96
  %v225 = vpop.permute.xlu0 %224
  %vm226 = vcmask 785408
  %v227 = vsel %vm226, %v223, %v225
  %v231 = vsel %vm226, %v225, %v223
  %v232 = vsel %vm221, 1, 0
  %v233 = vperm.slane %v232, 0
  %v234 = vperm.slane %v232, 1
  %vm235 = vcmp.eq.s32.totalorder %v233, 1
  %vm236 = vcmp.eq.s32.totalorder %v234, 1
  %v237 = vsel %vm235, %v227, 0.0
  %v238 = vsel %vm236, %v231, 0.0
  %v239 = vadd.f32 %v219, %v237
  %v240 = vadd.f32 %v220, %v238
  %vm241 = vcmp.ge.s32.totalorder %v56, 2
  %242 = vrot.lane.b32.xlu0 %v178, 32
  %v243 = vpop.permute.xlu0 %242
  %245 = vrot.lane.b32.xlu0 %v177, 32
  %v246 = vpop.permute.xlu0 %245
  %vm247 = vcmask 261120
  %v248 = vsel %vm247, %v246, %v243
  %v251 = vsel %vm247, %v243, %v246
  %v252 = vsel %vm241, 1, 0
  %v253 = vperm.slane %v252, 0
  %v254 = vperm.slane %v252, 1
  %vm255 = vcmp.eq.s32.totalorder %v253, 1
  %vm256 = vcmp.eq.s32.totalorder %v254, 1
  %v257 = vsel %vm255, %v251, 0.0
  %v258 = vsel %vm256, %v248, 0.0
  %v259 = vadd.f32 %v239, %v257
  %v260 = vadd.f32 %v240, %v258
  %vm261 = vcmp.le.s32.totalorder %v56, 12
  %262 = vrot.lane.b32.xlu0 %v177, 80
  %v263 = vpop.permute.xlu0 %262
  %264 = vrot.lane.b32.xlu0 %v178, 80
  %v265 = vpop.permute.xlu0 %264
  %vm266 = vcmask 654336
  %v267 = vsel %vm266, %v263, %v265
  %v271 = vsel %vm266, %v265, %v263
  %v272 = vsel %vm261, 1, 0
  %v273 = vperm.slane %v272, 0
  %v274 = vperm.slane %v272, 1
  %vm275 = vcmp.eq.s32.totalorder %v273, 1
  %vm276 = vcmp.eq.s32.totalorder %v274, 1
  %v277 = vsel %vm275, %v267, 0.0
  %v278 = vsel %vm276, %v271, 0.0
  %v279 = vadd.f32 %v259, %v277
  %v280 = vadd.f32 %v260, %v278
  %vm281 = vcmp.ge.s32.totalorder %v56, 3
  %282 = vrot.lane.b32.xlu0 %v178, 48
  %v283 = vpop.permute.xlu0 %282
  %285 = vrot.lane.b32.xlu0 %v177, 48
  %v286 = vpop.permute.xlu0 %285
  %vm287 = vcmask 392192
  %v288 = vsel %vm287, %v286, %v283
  %v291 = vsel %vm287, %v283, %v286
  %v292 = vsel %vm281, 1, 0
  %v293 = vperm.slane %v292, 0
  %v294 = vperm.slane %v292, 1
  %vm295 = vcmp.eq.s32.totalorder %v293, 1
  %vm296 = vcmp.eq.s32.totalorder %v294, 1
  %v297 = vsel %vm295, %v291, 0.0
  %v298 = vsel %vm296, %v288, 0.0
  %v299 = vadd.f32 %v279, %v297
  %v300 = vadd.f32 %v280, %v298
  %vm301 = vcmp.lt.f32.partialorder %v299, 1.0
  %vm302 = vcmp.lt.f32.partialorder %v300, 1.0
  %v303 = vsel %vm301, 1, 0
  %v304 = vsel %vm302, 1, 0
  %v305 = vcvt.s32.f32 %v303
  %v306 = vcvt.s32.f32 %v304
  %v307 = vrot.slane %v305, 4
  %v308 = vadd.f32 %v305, %v307
  %v309 = vrot.slane %v308, 2
  %v310 = vadd.f32 %v308, %v309
  %v311 = vrot.slane %v310, 1
  %v312 = vadd.f32 %v310, %v311
  %v313 = vrot.slane %v306, 4
  %v314 = vadd.f32 %v306, %v313
  %v315 = vrot.slane %v314, 2
  %v316 = vadd.f32 %v314, %v315
  %v317 = vrot.slane %v316, 1
  %v318 = vadd.f32 %v316, %v317
  %v321 = vrot.slane %v318, 7
  %vm322 = vcmask 1040384
  %v323 = vsel %vm322, %v312, %v321
  %v325 = vlaneseq
  %vm326 = vcmp.ge.s32.totalorder %v325, 0
  %vm327 = vcmp.lt.s32.totalorder %v325, 256
  %vm328 = vmand %vm326, %vm327
  %329 = vst.msk [vmem:[%s3] sm:$0x3] %vm328, %v323
  // Predicated region
  $region14: #{dropblock2d.2} parent=0 // pred_check
    _
  $region15: #{dropblock2d.2} parent=0 // pred_check_branch
    %331 = sbr.rel (0) target = $region17
  $region16: #{dropblock2d.2} parent=0 // pred_region
    _
  $region17: #{dropblock2d.2} parent=0 // pred_fallthru
    _
  // Predicated region
  $region18: #{dropblock2d.2} parent=0 // pred_check
    _
  $region19: #{dropblock2d.2} parent=0 // pred_check_branch
    %333 = sbr.rel (0) target = $region21
  $region20: #{dropblock2d.2} parent=0 // pred_region
    _
  $region21: #{dropblock2d.2} parent=0 // pred_fallthru
    _

// kernel: dropblock2d.3
$region0: #{dropblock2d.3}
  #allocation0 [shape = 'u32[]', space=smem, size = 0x4, offset = 0x4, fixed_abs, tag = 'smem constant byte address 0x4 - core index']
  #allocation1 [shape = 'u32[72,128]{1,0:T(1,128)}', space=vmem, size = 0x9000, scoped, tag = 'internal scratch']
  #allocation2 [shape = 's32[1]{0:T(128)S(6)}', space=smem, size = 0x200, scoped, tag = 'scoped memory for dropblock2d.3']
  #allocation3 [shape = 'f32[1]{0:T(128)S(6)}', space=smem, size = 0x200, scoped, tag = 'scoped memory for dropblock2d.3']
  %s0 = inlined_call_operand.<no memory space> [shape: s32[1], index: 0, kind: input, shape index: {}]
  %s1 = inlined_call_operand.<no memory space> [shape: f32[1], index: 1, kind: input, shape index: {}]
  %s2 = inlined_call_operand.vmem [shape: s32[1,256], index: 2, kind: input, shape index: {}]
  %s3 = inlined_call_operand.vmem [shape: s32[1,256], index: 3, kind: input, shape index: {}]
  %s4 = inlined_call_operand.vmem [shape: f32[8,256], index: 4, kind: input, shape index: {}]
  %s5 = inlined_call_operand.vmem [shape: f32[8,256], index: 5, kind: output, shape index: {}]
  %s6 = sld [smem:[#allocation0]]
  $region30: #{dropblock2d.3} parent=0
    _
  %s8 = ssub.s32 1, %s6
  %s9 = scalar_select 0, %s8, %s6
  %10 = sst [smem:[#allocation2]] %s0
  %11 = sst [smem:[#allocation3]] %s1
  // Predicated region
  $region2: #{dropblock2d.3} parent=0 // pred_check
    _
  $region3: #{dropblock2d.3} parent=0 // pred_check_branch
    %13 = sbr.rel (0) target = $region5
  $region4: #{dropblock2d.3} parent=0 // pred_region
    _
  $region5: #{dropblock2d.3} parent=0 // pred_fallthru
    _
  // Predicated region
  $region6: #{dropblock2d.3} parent=0 // pred_check
    _
  $region7: #{dropblock2d.3} parent=0 // pred_check_branch
    %15 = sbr.rel (0) target = $region9
  $region8: #{dropblock2d.3} parent=0 // pred_region
    _
  $region9: #{dropblock2d.3} parent=0 // pred_fallthru
    _
  // Predicated region
  $region10: #{dropblock2d.3} parent=0 // pred_check
    _
  $region11: #{dropblock2d.3} parent=0 // pred_check_branch
    %17 = sbr.rel (0) target = $region13
  $region12: #{dropblock2d.3} parent=0 // pred_region
    _
  $region13: #{dropblock2d.3} parent=0 // pred_fallthru
    _
  // Predicated region
  $region14: #{dropblock2d.3} parent=0 // pred_check
    _
  $region15: #{dropblock2d.3} parent=0 // pred_check_branch
    %19 = sbr.rel (0) target = $region17
  $region16: #{dropblock2d.3} parent=0 // pred_region
    _
  $region17: #{dropblock2d.3} parent=0 // pred_fallthru
    _
  // Predicated region
  $region18: #{dropblock2d.3} parent=0 // pred_check
    _
  $region19: #{dropblock2d.3} parent=0 // pred_check_branch
    %21 = sbr.rel (0) target = $region21
  $region20: #{dropblock2d.3} parent=0 // pred_region
    _
  $region21: #{dropblock2d.3} parent=0 // pred_fallthru
    _
  %s22 = smul.u32 0, 8
  %v23 = vlaneseq
  %v24 = vshrl.u32 %v23, 7
  %v25 = vstv %s22
  %v26 = vadd.s32 %v25, %v24
  %v27 = vlaneseq
  %v28 = vand.u32 %v27, 127
  %v29 = vadd.s32 %v28, 128
  %v30 = vmul.u32 %v26, 256
  %v31 = vadd.s32 %v30, %v28
  %v32 = vadd.s32 %v30, %v29
  %s33 = sld [smem:[#allocation2]]
  %s34 = smul.u32 %s33, 2654435769
  %v35 = vstv %s34
  %v36 = vxor.u32 %v31, %v35
  %v37 = vxor.u32 %v32, %v35
  %v38 = vshrl.u32 %v36, 16
  %v39 = vshrl.u32 %v37, 16
  %v40 = vxor.u32 %v36, %v38
  %v41 = vxor.u32 %v37, %v39
  %v42 = vmul.u32 %v40, 2246822507
  %v43 = vmul.u32 %v41, 2246822507
  %v44 = vshrl.u32 %v42, 13
  %v45 = vshrl.u32 %v43, 13
  %v46 = vxor.u32 %v42, %v44
  %v47 = vxor.u32 %v43, %v45
  %v48 = vmul.u32 %v46, 3266489909
  %v49 = vmul.u32 %v47, 3266489909
  %v50 = vshrl.u32 %v48, 16
  %v51 = vshrl.u32 %v49, 16
  %v52 = vxor.u32 %v48, %v50
  %v53 = vxor.u32 %v49, %v51
  %v54 = vshrl.u32 %v52, 8
  %v55 = vshrl.u32 %v53, 8
  %vm56 = vcmp.lt.s32.totalorder %v54, 87652
  %vm57 = vcmp.lt.s32.totalorder %v55, 87652
  %v58 = vsel %vm56, 1, 0
  %v59 = vsel %vm57, 1, 0
  %v60 = vcvt.s32.f32 %v58
  %v61 = vcvt.s32.f32 %v59
  %v62 = vld [vmem:[%s2] sm:$0x3]
  %v63 = vld [vmem:[%s3] sm:$0x3]
  %vm64 = vcmp.le.s32.totalorder %v62, 14
  %67 = vrot.lane.b32.xlu0 %v60, 127
  %v68 = vpop.permute.xlu0 %67
  %69 = vrot.lane.b32.xlu0 %v61, 127
  %v70 = vpop.permute.xlu0 %69
  %vm71 = vcmask 1039360
  %v72 = vsel %vm71, %v68, %v70
  %v76 = vsel %vm71, %v70, %v68
  %v77 = vsel %vm64, 1, 0
  %v78 = vperm.slane %v77, 0
  %v79 = vperm.slane %v77, 1
  %vm80 = vcmp.eq.s32.totalorder %v78, 1
  %vm81 = vcmp.eq.s32.totalorder %v79, 1
  %v82 = vsel %vm80, %v72, 0.0
  %v83 = vsel %vm81, %v76, 0.0
  %v84 = vadd.f32 %v60, %v82
  %v85 = vadd.f32 %v61, %v83
  %vm86 = vcmp.ge.s32.totalorder %v62, 1
  %87 = vrot.lane.b32.xlu0 %v61, 1
  %v88 = vpop.permute.xlu0 %87
  %90 = vrot.lane.b32.xlu0 %v60, 1
  %v91 = vpop.permute.xlu0 %90
  %vm92 = vcmask 7168
  %v93 = vsel %vm92, %v91, %v88
  %v96 = vsel %vm92, %v88, %v91
  %v97 = vsel %vm86, 1, 0
  %v98 = vperm.slane %v97, 0
  %v99 = vperm.slane %v97, 1
  %vm100 = vcmp.eq.s32.totalorder %v98, 1
  %vm101 = vcmp.eq.s32.totalorder %v99, 1
  %v102 = vsel %vm100, %v96, 0.0
  %v103 = vsel %vm101, %v93, 0.0
  %v104 = vadd.f32 %v84, %v102
  %v105 = vadd.f32 %v85, %v103
  %vm106 = vcmp.le.s32.totalorder %v62, 13
  %107 = vrot.lane.b32.xlu0 %v60, 126
  %v108 = vpop.permute.xlu0 %107
  %109 = vrot.lane.b32.xlu0 %v61, 126
  %v110 = vpop.permute.xlu0 %109
  %vm111 = vcmask 1031168
  %v112 = vsel %vm111, %v108, %v110
  %v116 = vsel %vm111, %v110, %v108
  %v117 = vsel %vm106, 1, 0
  %v118 = vperm.slane %v117, 0
  %v119 = vperm.slane %v117, 1
  %vm120 = vcmp.eq.s32.totalorder %v118, 1
  %vm121 = vcmp.eq.s32.totalorder %v119, 1
  %v122 = vsel %vm120, %v112, 0.0
  %v123 = vsel %vm121, %v116, 0.0
  %v124 = vadd.f32 %v104, %v122
  %v125 = vadd.f32 %v105, %v123
  %vm126 = vcmp.ge.s32.totalorder %v62, 2
  %127 = vrot.lane.b32.xlu0 %v61, 2
  %v128 = vpop.permute.xlu0 %127
  %130 = vrot.lane.b32.xlu0 %v60, 2
  %v131 = vpop.permute.xlu0 %130
  %vm132 = vcmask 15360
  %v133 = vsel %vm132, %v131, %v128
  %v136 = vsel %vm132, %v128, %v131
  %v137 = vsel %vm126, 1, 0
  %v138 = vperm.slane %v137, 0
  %v139 = vperm.slane %v137, 1
  %vm140 = vcmp.eq.s32.totalorder %v138, 1
  %vm141 = vcmp.eq.s32.totalorder %v139, 1
  %v142 = vsel %vm140, %v136, 0.0
  %v143 = vsel %vm141, %v133, 0.0
  %v144 = vadd.f32 %v124, %v142
  %v145 = vadd.f32 %v125, %v143
  %vm146 = vcmp.le.s32.totalorder %v62, 12
  %147 = vrot.lane.b32.xlu0 %v60, 125
  %v148 = vpop.permute.xlu0 %147
  %149 = vrot.lane.b32.xlu0 %v61, 125
  %v150 = vpop.permute.xlu0 %149
  %vm151 = vcmask 1022976
  %v152 = vsel %vm151, %v148, %v150
  %v156 = vsel %vm151, %v150, %v148
  %v157 = vsel %vm146, 1, 0
  %v158 = vperm.slane %v157, 0
  %v159 = vperm.slane %v157, 1
  %vm160 = vcmp.eq.s32.totalorder %v158, 1
  %vm161 = vcmp.eq.s32.totalorder %v159, 1
  %v162 = vsel %vm160, %v152, 0.0
  %v163 = vsel %vm161, %v156, 0.0
  %v164 = vadd.f32 %v144, %v162
  %v165 = vadd.f32 %v145, %v163
  %vm166 = vcmp.ge.s32.totalorder %v62, 3
  %167 = vrot.lane.b32.xlu0 %v61, 3
  %v168 = vpop.permute.xlu0 %167
  %170 = vrot.lane.b32.xlu0 %v60, 3
  %v171 = vpop.permute.xlu0 %170
  %vm172 = vcmask 23552
  %v173 = vsel %vm172, %v171, %v168
  %v176 = vsel %vm172, %v168, %v171
  %v177 = vsel %vm166, 1, 0
  %v178 = vperm.slane %v177, 0
  %v179 = vperm.slane %v177, 1
  %vm180 = vcmp.eq.s32.totalorder %v178, 1
  %vm181 = vcmp.eq.s32.totalorder %v179, 1
  %v182 = vsel %vm180, %v176, 0.0
  %v183 = vsel %vm181, %v173, 0.0
  %v184 = vadd.f32 %v164, %v182
  %v185 = vadd.f32 %v165, %v183
  %vm186 = vcmp.le.s32.totalorder %v63, 14
  %189 = vrot.lane.b32.xlu0 %v184, 112
  %v190 = vpop.permute.xlu0 %189
  %191 = vrot.lane.b32.xlu0 %v185, 112
  %v192 = vpop.permute.xlu0 %191
  %vm193 = vcmask 916480
  %v194 = vsel %vm193, %v190, %v192
  %v198 = vsel %vm193, %v192, %v190
  %v199 = vsel %vm186, 1, 0
  %v200 = vperm.slane %v199, 0
  %v201 = vperm.slane %v199, 1
  %vm202 = vcmp.eq.s32.totalorder %v200, 1
  %vm203 = vcmp.eq.s32.totalorder %v201, 1
  %v204 = vsel %vm202, %v194, 0.0
  %v205 = vsel %vm203, %v198, 0.0
  %v206 = vadd.f32 %v184, %v204
  %v207 = vadd.f32 %v185, %v205
  %vm208 = vcmp.ge.s32.totalorder %v63, 1
  %209 = vrot.lane.b32.xlu0 %v185, 16
  %v210 = vpop.permute.xlu0 %209
  %212 = vrot.lane.b32.xlu0 %v184, 16
  %v213 = vpop.permute.xlu0 %212
  %vm214 = vcmask 130048
  %v215 = vsel %vm214, %v213, %v210
  %v218 = vsel %vm214, %v210, %v213
  %v219 = vsel %vm208, 1, 0
  %v220 = vperm.slane %v219, 0
  %v221 = vperm.slane %v219, 1
  %vm222 = vcmp.eq.s32.totalorder %v220, 1
  %vm223 = vcmp.eq.s32.totalorder %v221, 1
  %v224 = vsel %vm222, %v218, 0.0
  %v225 = vsel %vm223, %v215, 0.0
  %v226 = vadd.f32 %v206, %v224
  %v227 = vadd.f32 %v207, %v225
  %vm228 = vcmp.le.s32.totalorder %v63, 13
  %229 = vrot.lane.b32.xlu0 %v184, 96
  %v230 = vpop.permute.xlu0 %229
  %231 = vrot.lane.b32.xlu0 %v185, 96
  %v232 = vpop.permute.xlu0 %231
  %vm233 = vcmask 785408
  %v234 = vsel %vm233, %v230, %v232
  %v238 = vsel %vm233, %v232, %v230
  %v239 = vsel %vm228, 1, 0
  %v240 = vperm.slane %v239, 0
  %v241 = vperm.slane %v239, 1
  %vm242 = vcmp.eq.s32.totalorder %v240, 1
  %vm243 = vcmp.eq.s32.totalorder %v241, 1
  %v244 = vsel %vm242, %v234, 0.0
  %v245 = vsel %vm243, %v238, 0.0
  %v246 = vadd.f32 %v226, %v244
  %v247 = vadd.f32 %v227, %v245
  %vm248 = vcmp.ge.s32.totalorder %v63, 2
  %249 = vrot.lane.b32.xlu0 %v185, 32
  %v250 = vpop.permute.xlu0 %249
  %252 = vrot.lane.b32.xlu0 %v184, 32
  %v253 = vpop.permute.xlu0 %252
  %vm254 = vcmask 261120
  %v255 = vsel %vm254, %v253, %v250
  %v258 = vsel %vm254, %v250, %v253
  %v259 = vsel %vm248, 1, 0
  %v260 = vperm.slane %v259, 0
  %v261 = vperm.slane %v259, 1
  %vm262 = vcmp.eq.s32.totalorder %v260, 1
  %vm263 = vcmp.eq.s32.totalorder %v261, 1
  %v264 = vsel %vm262, %v258, 0.0
  %v265 = vsel %vm263, %v255, 0.0
  %v266 = vadd.f32 %v246, %v264
  %v267 = vadd.f32 %v247, %v265
  %vm268 = vcmp.le.s32.totalorder %v63, 12
  %269 = vrot.lane.b32.xlu0 %v184, 80
  %v270 = vpop.permute.xlu0 %269
  %271 = vrot.lane.b32.xlu0 %v185, 80
  %v272 = vpop.permute.xlu0 %271
  %vm273 = vcmask 654336
  %v274 = vsel %vm273, %v270, %v272
  %v278 = vsel %vm273, %v272, %v270
  %v279 = vsel %vm268, 1, 0
  %v280 = vperm.slane %v279, 0
  %v281 = vperm.slane %v279, 1
  %vm282 = vcmp.eq.s32.totalorder %v280, 1
  %vm283 = vcmp.eq.s32.totalorder %v281, 1
  %v284 = vsel %vm282, %v274, 0.0
  %v285 = vsel %vm283, %v278, 0.0
  %v286 = vadd.f32 %v266, %v284
  %v287 = vadd.f32 %v267, %v285
  %vm288 = vcmp.ge.s32.totalorder %v63, 3
  %289 = vrot.lane.b32.xlu0 %v185, 48
  %v290 = vpop.permute.xlu0 %289
  %292 = vrot.lane.b32.xlu0 %v184, 48
  %v293 = vpop.permute.xlu0 %292
  %vm294 = vcmask 392192
  %v295 = vsel %vm294, %v293, %v290
  %v298 = vsel %vm294, %v290, %v293
  %v299 = vsel %vm288, 1, 0
  %v300 = vperm.slane %v299, 0
  %v301 = vperm.slane %v299, 1
  %vm302 = vcmp.eq.s32.totalorder %v300, 1
  %vm303 = vcmp.eq.s32.totalorder %v301, 1
  %v304 = vsel %vm302, %v298, 0.0
  %v305 = vsel %vm303, %v295, 0.0
  %v306 = vadd.f32 %v286, %v304
  %v307 = vadd.f32 %v287, %v305
  %vm308 = vcmp.lt.f32.partialorder %v306, 1.0
  %vm309 = vcmp.lt.f32.partialorder %v307, 1.0
  %v310 = vsel %vm308, 1, 0
  %v311 = vsel %vm309, 1, 0
  %v312 = vcvt.s32.f32 %v310
  %v313 = vcvt.s32.f32 %v311
  %v314 = vld [vmem:[%s4] sm:$0xff]
  %v315 = vld [vmem:[%s4 + $0x8] sm:$0xff]
  %v316 = vmul.f32 %v314, %v312
  %v317 = vmul.f32 %v315, %v313
  %s318 = sld [smem:[#allocation3]]
  %v319 = vstv %s318
  %v320 = vmul.f32 %v316, %v319
  %v321 = vmul.f32 %v317, %v319
  %322 = vst [vmem:[%s5] sm:$0xff] %v320
  %323 = vst [vmem:[%s5 + $0x8] sm:$0xff] %v321
  // Predicated region
  $region22: #{dropblock2d.3} parent=0 // pred_check
    _
  $region23: #{dropblock2d.3} parent=0 // pred_check_branch
    %325 = sbr.rel (0) target = $region25
  $region24: #{dropblock2d.3} parent=0 // pred_region
    _
  $region25: #{dropblock2d.3} parent=0 // pred_fallthru
    _
  // Predicated region
  $region26: #{dropblock2d.3} parent=0 // pred_check
    _
  $region27: #{dropblock2d.3} parent=0 // pred_check_branch
    %327 = sbr.rel (0) target = $region29
  $region28: #{dropblock2d.3} parent=0 // pred_region
    _
  $region29: #{dropblock2d.3} parent=0 // pred_fallthru
    _

</llo_original>
